<compile_context>
chip_gen: v5e
topology: v5e:2x2
jax: 0.10.0
libtpu: 0.0.40
codegen_flags: <defaults>
</compile_context>

<pallas_src>
import functools

import jax
import jax.numpy as jnp
from jax.experimental import pallas as pl
from jax.experimental.pallas import tpu as pltpu


# Tile caps: worst-case double-buffered footprint
#   2*(tm*tk + tk*tn)*2B (bf16 in) + 2*tm*tn*4B (f32 out) + tm*tn*4B (f32 acc) ~= 3.5 MiB
# -> comfortably inside the 32 MiB scoped VMEM on v7x (and trivially on v5e/v6e).
_TM_MAX = 256
_TN_MAX = 512
_TK_MAX = 512


def _round_up(x, m):
    return ((x + m - 1) // m) * m


def _pick_tiles(B, D, C):
    """Lane-dense tiles: last dims multiples of 128, sublane dim multiple of 16 (bf16)."""
    tm = min(_TM_MAX, _round_up(B, 16))
    tn = min(_TN_MAX, _round_up(C, 128))
    tk = min(_TK_MAX, _round_up(D, 128))
    return tm, tn, tk


def _sigmoid_svm_kernel(x_ref, wt_ref, bias_ref, out_ref, acc_ref, *, r):
    k = pl.program_id(2)

    @pl.when(k == 0)
    def _():
        acc_ref[...] = jnp.zeros_like(acc_ref)

    # MXU: bf16 x bf16 -> f32 accumulate (gamma already folded into the weights).
    acc_ref[...] += jnp.dot(x_ref[...], wt_ref[...],
                            preferred_element_type=jnp.float32)

    @pl.when(k == pl.num_programs(2) - 1)
    def _():
        out_ref[...] = (jnp.tanh(acc_ref[...] + r) + bias_ref[...]).astype(out_ref.dtype)


def prepare_sigmoid_svm_params(weights, bias, gamma, *, tn, tk):
    """One-time parameter transform (init-time, NOT per forward call):
    fold gamma into W, transpose to [D, C], zero-pad D/C to tile multiples,
    cast the GEMM operand to bf16. Bias stays f32, zero-padded on C."""
    C, D = weights.shape
    D_pad = _round_up(D, tk)
    C_pad = _round_up(C, tn)
    wt = (gamma * weights.astype(jnp.float32)).T                       # [D, C]
    wt = jnp.pad(wt, ((0, D_pad - D), (0, C_pad - C))).astype(jnp.bfloat16)
    bias2d = jnp.pad(bias.astype(jnp.float32).reshape(1, C),
                     ((0, 0), (0, C_pad - C)))                         # [1, C_pad]
    return wt, bias2d


@functools.partial(jax.jit, static_argnames=("r", "num_classes", "tm", "tn", "tk"))
def sigmoid_svm_forward(x, wt_padded, bias2d, *, r, num_classes, tm, tn, tk):
    """x: [B, D] -> [B, num_classes]. wt_padded/bias2d come from prepare_sigmoid_svm_params."""
    B, D = x.shape
    D_pad, C_pad = wt_padded.shape
    B_pad = _round_up(B, tm)

    # Zero-padding keeps the contraction exact; padded output rows/cols are sliced off.
    x_p = jnp.pad(x.astype(jnp.bfloat16), ((0, B_pad - B), (0, D_pad - D)))

    grid = (B_pad // tm, C_pad // tn, D_pad // tk)
    kernel = functools.partial(_sigmoid_svm_kernel, r=float(r))

    out_padded = pl.pallas_call(
        kernel,
        out_shape=jax.ShapeDtypeStruct((B_pad, C_pad), jnp.float32),
        grid_spec=pltpu.PrefetchScalarGridSpec(
            num_scalar_prefetch=0,
            grid=grid,
            in_specs=[
                pl.BlockSpec((tm, tk), lambda i, j, k: (i, k)),   # x tile      [tm, tk]
                pl.BlockSpec((tk, tn), lambda i, j, k: (k, j)),   # W^T tile    [tk, tn]
                pl.BlockSpec((1, tn), lambda i, j, k: (0, j)),    # bias tile   [1,  tn]
            ],
            out_specs=pl.BlockSpec((tm, tn), lambda i, j, k: (i, j)),
            scratch_shapes=[pltpu.VMEM((tm, tn), jnp.float32)],   # f32 accumulator
        ),
        compiler_params=pltpu.CompilerParams(
            # M/N independent -> megacore sharding on v7x; K is the reduction axis.
            dimension_semantics=("parallel", "parallel", "arbitrary"),
            vmem_limit_bytes=32 * 1024 * 1024,
        ),
    )(x_p, wt_padded, bias2d)

    return out_padded[:B, :num_classes]


if __name__ == "__main__":
    # Small, module-consistent shapes (tiling decisions only matter at real B/D/C).
    batch = 8
    input_size = 32
    num_classes = 16
    gamma = 0.5
    r = 0.25

    key = jax.random.PRNGKey(0)
    kx, kw = jax.random.split(key)

    x = jax.random.normal(kx, (batch, input_size), dtype=jnp.float32)
    weights = jax.random.normal(kw, (num_classes, input_size), dtype=jnp.float32)
    bias = jnp.zeros((num_classes,), dtype=jnp.float32)

    tm, tn, tk = _pick_tiles(batch, input_size, num_classes)

    # One-time parameter prep (fold gamma, transpose, pad, bf16 cast).
    wt_padded, bias2d = prepare_sigmoid_svm_params(weights, bias, gamma, tn=tn, tk=tk)

    out = sigmoid_svm_forward(
        x, wt_padded, bias2d,
        r=r, num_classes=num_classes, tm=tm, tn=tn, tk=tk)
    out = jax.block_until_ready(out)

    # Reference in plain f32 JAX (same semantics as the PyTorch forward).
    ref = jnp.tanh(gamma * (x @ weights.T) + r) + bias
    assert out.shape == (batch, num_classes)
    # GEMM operands are bf16 -> looser tolerance vs the pure-f32 reference.
    assert jnp.allclose(out, ref, atol=5e-2, rtol=5e-2), "mismatch vs reference"

    print("KERNEL_OK")
</pallas_src>

<mosaic_0001>
module attributes {stable_mosaic.version = 11 : i64} {
  func.func @_sigmoid_svm_kernel(%arg0: i32, %arg1: i32, %arg2: i32, %arg3: memref<16x128xbf16, #tpu.memory_space<vmem>>, %arg4: memref<128x128xbf16, #tpu.memory_space<vmem>>, %arg5: memref<1x128xf32, #tpu.memory_space<vmem>>, %arg6: memref<16x128xf32, #tpu.memory_space<vmem>>, %arg7: memref<16x128xf32, #tpu.memory_space<vmem>>) attributes {dimension_semantics = [#tpu.dimension_semantics<parallel>, #tpu.dimension_semantics<parallel>, #tpu.dimension_semantics<arbitrary>], iteration_bounds = array<i64: 1, 1, 1>, scalar_prefetch = 0 : i64, scratch_operands = 1 : i64, tpu.core_type = #tpu.core_type<tc>, window_params = [{transform_indices = @transform_0, window_bounds = array<i64: 16, 128>}, {transform_indices = @transform_1, window_bounds = array<i64: 128, 128>}, {transform_indices = @transform_2, window_bounds = array<i64: 1, 128>}, {transform_indices = @transform_3, window_bounds = array<i64: 16, 128>}]} {
    %c0_i32 = arith.constant 0 : i32
    %0 = arith.cmpi eq, %arg2, %c0_i32 : i32
    %1 = arith.extui %0 : i1 to i32
    %c0_i32_0 = arith.constant 0 : i32
    %2 = arith.cmpi ne, %1, %c0_i32_0 : i32
    scf.if %2 {
      %cst_10 = arith.constant 0.000000e+00 : f32
      %12 = vector.broadcast %cst_10 : f32 to vector<16x128xf32>
      %c0_11 = arith.constant 0 : index
      %c0_12 = arith.constant 0 : index
      %13 = vector.load %arg7[%c0_11, %c0_12] : memref<16x128xf32, #tpu.memory_space<vmem>>, vector<16x128xf32>
      tpu.vector_store %arg7[%c0_11, %c0_12], %12 {strides = array<i32>} : memref<16x128xf32, #tpu.memory_space<vmem>>, vector<16x128xf32>,
    } else {
    }
    %c0 = arith.constant 0 : index
    %c0_1 = arith.constant 0 : index
    %3 = vector.load %arg7[%c0, %c0_1] : memref<16x128xf32, #tpu.memory_space<vmem>>, vector<16x128xf32>
    %c0_2 = arith.constant 0 : index
    %c0_3 = arith.constant 0 : index
    %4 = vector.load %arg3[%c0_2, %c0_3] : memref<16x128xbf16, #tpu.memory_space<vmem>>, vector<16x128xbf16>
    %c0_4 = arith.constant 0 : index
    %c0_5 = arith.constant 0 : index
    %5 = vector.load %arg4[%c0_4, %c0_5] : memref<128x128xbf16, #tpu.memory_space<vmem>>, vector<128x128xbf16>
    %cst = arith.constant dense<0.000000e+00> : vector<16x128xf32>
    %6 = tpu.matmul %4, %5, %cst {dimension_numbers = #tpu.dot_dimension_numbers<[1], [0], [0], [1], [0, 0, 1, 1], [], []>} : vector<16x128xbf16>, vector<128x128xbf16>, vector<16x128xf32> -> vector<16x128xf32>
    %7 = arith.addf %3, %6 : vector<16x128xf32>
    %c0_6 = arith.constant 0 : index
    %c0_7 = arith.constant 0 : index
    %8 = vector.load %arg7[%c0_6, %c0_7] : memref<16x128xf32, #tpu.memory_space<vmem>>, vector<16x128xf32>
    tpu.vector_store %arg7[%c0_6, %c0_7], %7 {strides = array<i32>} : memref<16x128xf32, #tpu.memory_space<vmem>>, vector<16x128xf32>,
    %c0_i32_8 = arith.constant 0 : i32
    %9 = arith.cmpi eq, %arg2, %c0_i32_8 : i32
    %10 = arith.extui %9 : i1 to i32
    %c0_i32_9 = arith.constant 0 : i32
    %11 = arith.cmpi ne, %10, %c0_i32_9 : i32
    scf.if %11 {
      %c0_10 = arith.constant 0 : index
      %c0_11 = arith.constant 0 : index
      %12 = vector.load %arg7[%c0_10, %c0_11] : memref<16x128xf32, #tpu.memory_space<vmem>>, vector<16x128xf32>
      %cst_12 = arith.constant 2.500000e-01 : f32
      %13 = vector.broadcast %cst_12 : f32 to vector<16x128xf32>
      %14 = arith.addf %12, %13 : vector<16x128xf32>
      %15 = math.tanh %14 : vector<16x128xf32>
      %c0_13 = arith.constant 0 : index
      %c0_14 = arith.constant 0 : index
      %16 = vector.load %arg5[%c0_13, %c0_14] : memref<1x128xf32, #tpu.memory_space<vmem>>, vector<1x128xf32>
      %17 = vector.broadcast %16 : vector<1x128xf32> to vector<16x128xf32>
      %18 = arith.addf %15, %17 : vector<16x128xf32>
      %c0_15 = arith.constant 0 : index
      %c0_16 = arith.constant 0 : index
      %19 = vector.load %arg6[%c0_15, %c0_16] : memref<16x128xf32, #tpu.memory_space<vmem>>, vector<16x128xf32>
      tpu.vector_store %arg6[%c0_15, %c0_16], %18 {strides = array<i32>} : memref<16x128xf32, #tpu.memory_space<vmem>>, vector<16x128xf32>,
    } else {
    }
    return
  }
  func.func @transform_0(%arg0: i32, %arg1: i32, %arg2: i32) -> (i32, i32) {
    %c0_i32 = arith.constant 0 : i32
    return %arg0, %arg2 : i32, i32
  }
  func.func @transform_1(%arg0: i32, %arg1: i32, %arg2: i32) -> (i32, i32) {
    %c0_i32 = arith.constant 0 : i32
    return %arg2, %arg1 : i32, i32
  }
  func.func @transform_2(%arg0: i32, %arg1: i32, %arg2: i32) -> (i32, i32) {
    %c0_i32 = arith.constant 0 : i32
    %c0_i32_0 = arith.constant 0 : i32
    return %c0_i32, %arg1 : i32, i32
  }
  func.func @transform_3(%arg0: i32, %arg1: i32, %arg2: i32) -> (i32, i32) {
    %c0_i32 = arith.constant 0 : i32
    return %arg0, %arg1 : i32, i32
  }
}

</mosaic_0001>

<llo_original>
// kernel: sigmoid_svm_forward.1
$region0: #{sigmoid_svm_forward.1}
  #allocation0 [shape = 'u32[]', space=smem, size = 0x4, offset = 0x4, fixed_abs, tag = 'smem constant byte address 0x4 - core index']
  #allocation1 [shape = 'u32[72,128]{1,0:T(1,128)}', space=vmem, size = 0x9000, scoped, tag = 'internal scratch']
  #allocation2 [shape = 'f32[16,128]{1,0:T(8,128)}', space=vmem, size = 0x2000, scoped, tag = 'scratch operand']
  %s0 = inlined_call_operand.vmem [shape: bf16[16,128], index: 0, kind: input, shape index: {}]
  %s1 = inlined_call_operand.hbm [shape: bf16[128,128], index: 1, kind: input, shape index: {}]
  %s2 = inlined_call_operand.vmem [shape: f32[1,128], index: 2, kind: input, shape index: {}]
  %s3 = inlined_call_operand.vmem [shape: f32[16,128], index: 3, kind: output, shape index: {}]
  %s4 = sld [smem:[#allocation0]]
  $region34: #{sigmoid_svm_forward.1} parent=0
    _
  %s6 = ssub.s32 1, %s4
  %s7 = scalar_select 0, %s6, %s4
  $region1: #{sigmoid_svm_forward.1} parent=0
    #allocation3 [shape = 'u8[32768]{0}', space=vmem, size = 0x8000, scoped, tag = 'input window, operand 1, single buffered']
    #allocation4 [shape = 's32[1]{0}', space=sflag, size = 0x4, scoped, tag = 'scoped memory for sigmoid_svm_forward.1']
    %8 = vsyncpa [#allocation4], 0
    // Predicated region
    $region2: #{sigmoid_svm_forward.1} parent=1 // pred_check
      _
    $region3: #{sigmoid_svm_forward.1} parent=1 // pred_check_branch
      %10 = sbr.rel (0) target = $region5
    $region4: #{sigmoid_svm_forward.1} parent=1 // pred_region
      _
    $region5: #{sigmoid_svm_forward.1} parent=1 // pred_fallthru
      _
    // Predicated region
    $region6: #{sigmoid_svm_forward.1} parent=1 // pred_check
      _
    $region7: #{sigmoid_svm_forward.1} parent=1 // pred_check_branch
      %12 = sbr.rel (0) target = $region9
    $region8: #{sigmoid_svm_forward.1} parent=1 // pred_region
      %14 = vsyncadd [#allocation4], 0
      %s15 = sshll.u32 %s1, 4
      %s16 = int_to_ptr.hbm [resolvable:$true] %s15
      %s17 = sshll.u32 [#allocation3], 4
      %s18 = int_to_ptr.vmem [resolvable:$true] %s17
      %23 = dma.hbm_to_vmem [thread:$0]  %s16, 1024, %s18, [#allocation4], 64, 64, 4
    $region9: #{sigmoid_svm_forward.1} parent=1 // pred_fallthru
      _
    // Predicated region
    $region10: #{sigmoid_svm_forward.1} parent=1 // pred_check
      _
    $region11: #{sigmoid_svm_forward.1} parent=1 // pred_check_branch
      %25 = sbr.rel (0) target = $region13
    $region12: #{sigmoid_svm_forward.1} parent=1 // pred_region
      _
    $region13: #{sigmoid_svm_forward.1} parent=1 // pred_fallthru
      _
    // Predicated region
    $region14: #{sigmoid_svm_forward.1} parent=1 // pred_check
      _
    $region15: #{sigmoid_svm_forward.1} parent=1 // pred_check_branch
      %27 = sbr.rel (0) target = $region17
    $region16: #{sigmoid_svm_forward.1} parent=1 // pred_region
      %29 = dma.done [#allocation4], 1024
    $region17: #{sigmoid_svm_forward.1} parent=1 // pred_fallthru
      _
    %p30 = scmp.eq.s32.totalorder 0, 0
    // Predicated region
    $region18: #{sigmoid_svm_forward.1} parent=1 // pred_check
      %p31 = pneg %p30
    $region19: #{sigmoid_svm_forward.1} parent=1 // pred_check_branch
      %33 = sbr.rel (%p31) target = $region21
    $region20: #{sigmoid_svm_forward.1} parent=1 // pred_region
      %34 = vst [vmem:[#allocation2] sm:$0xff] 0.0
      %35 = vst [vmem:[#allocation2 + $0x8] sm:$0xff] 0.0
    $region21: #{sigmoid_svm_forward.1} parent=1 // pred_fallthru
      _
    %v36 = vld [vmem:[#allocation2] sm:$0xff]
    %v37 = vld [vmem:[#allocation2 + $0x8] sm:$0xff]
    %v38 = vld [vmem:[%s0] sm:$0xf]
    %v39 = vld [vmem:[%s0 + $0x4] sm:$0xf]
    %v40 = vld [vmem:[#allocation3] sm:$0xf]
    %v41 = vld [vmem:[#allocation3 + $0x4] sm:$0xf]
    %v42 = vld [vmem:[#allocation3 + $0x8] sm:$0xf]
    %v43 = vld [vmem:[#allocation3 + $0xc] sm:$0xf]
    %v44 = vld [vmem:[#allocation3 + $0x10] sm:$0xf]
    %v45 = vld [vmem:[#allocation3 + $0x14] sm:$0xf]
    %v46 = vld [vmem:[#allocation3 + $0x18] sm:$0xf]
    %v47 = vld [vmem:[#allocation3 + $0x1c] sm:$0xf]
    %v48 = vld [vmem:[#allocation3 + $0x20] sm:$0xf]
    %v49 = vld [vmem:[#allocation3 + $0x24] sm:$0xf]
    %v50 = vld [vmem:[#allocation3 + $0x28] sm:$0xf]
    %v51 = vld [vmem:[#allocation3 + $0x2c] sm:$0xf]
    %v52 = vld [vmem:[#allocation3 + $0x30] sm:$0xf]
    %v53 = vld [vmem:[#allocation3 + $0x34] sm:$0xf]
    %v54 = vld [vmem:[#allocation3 + $0x38] sm:$0xf]
    %v55 = vld [vmem:[#allocation3 + $0x3c] sm:$0xf]
    %v58 = vunpack.c.l.b16 %v38
    %v59 = vunpack.c.l.b16 %v39
    %v60 = vpack.c.b16 %v59, %v58
    %v78 = vunpack.c.l.b16 %v40
    %v79 = vunpack.c.l.b16 %v41
    %v80 = vunpack.c.l.b16 %v42
    %v81 = vunpack.c.l.b16 %v43
    %v82 = vunpack.c.l.b16 %v44
    %v83 = vunpack.c.l.b16 %v45
    %v84 = vunpack.c.l.b16 %v46
    %v85 = vunpack.c.l.b16 %v47
    %v86 = vunpack.c.l.b16 %v48
    %v87 = vunpack.c.l.b16 %v49
    %v88 = vunpack.c.l.b16 %v50
    %v89 = vunpack.c.l.b16 %v51
    %v90 = vunpack.c.l.b16 %v52
    %v91 = vunpack.c.l.b16 %v53
    %v92 = vunpack.c.l.b16 %v54
    %v93 = vunpack.c.l.b16 %v55
    %v94 = vpack.c.b16 %v79, %v78
    %v95 = vpack.c.b16 %v81, %v80
    %v96 = vpack.c.b16 %v83, %v82
    %v97 = vpack.c.b16 %v85, %v84
    %v98 = vpack.c.b16 %v87, %v86
    %v99 = vpack.c.b16 %v89, %v88
    %v100 = vpack.c.b16 %v91, %v90
    %v101 = vpack.c.b16 %v93, %v92
    %110 = vmatpush.bf16.msra.mxu0 %v101
    %111 = vmatpush.bf16.msra.mxu0 %v100
    %112 = vmatpush.bf16.msra.mxu0 %v99
    %113 = vmatpush.bf16.msra.mxu0 %v98
    %114 = vmatpush.bf16.msra.mxu0 %v97
    %115 = vmatpush.bf16.msra.mxu0 %v96
    %116 = vmatpush.bf16.msra.mxu0 %v95
    %117 = vmatpush.bf16.msra.mxu0 %v94
    %118 = vmatmul.bf16.gmra.mxu0 %v60
    %v119 = vpop.f32.mrf.mxu0
    %v120 = vadd.f32 0.0, %v119
    %v121 = vpop.f32.mrf.mxu0
    %v122 = vadd.f32 0.0, %v121
    %123 = vdwg.mxu0
    %v124 = vadd.f32 %v36, %v120
    %v125 = vadd.f32 %v37, %v122
    %126 = vst [vmem:[#allocation2] sm:$0xff] %v124
    %127 = vst [vmem:[#allocation2 + $0x8] sm:$0xff] %v125
    // Predicated region
    $region22: #{sigmoid_svm_forward.1} parent=1 // pred_check
      %p128 = pneg %p30
    $region23: #{sigmoid_svm_forward.1} parent=1 // pred_check_branch
      %130 = sbr.rel (%p128) target = $region25
    $region24: #{sigmoid_svm_forward.1} parent=1 // pred_region
      %v131 = vld [vmem:[#allocation2] sm:$0xff]
      %v132 = vld [vmem:[#allocation2 + $0x8] sm:$0xff]
      %v133 = vadd.f32 %v131, 0.25
      %v134 = vadd.f32 %v132, 0.25
      %v135 = vtanh.pop %v133
      %v136 = vtanh.pop %v134
      %v137 = vld [vmem:[%s2] sm:$0x1]
      %v139 = vperm.slane %v137, 0
      %v141 = vadd.f32 %v135, %v139
      %v142 = vadd.f32 %v136, %v139
      %143 = vst [vmem:[%s3] sm:$0xff] %v141
      %144 = vst [vmem:[%s3 + $0x8] sm:$0xff] %v142
    $region25: #{sigmoid_svm_forward.1} parent=1 // pred_fallthru
      _
    // Predicated region
    $region26: #{sigmoid_svm_forward.1} parent=1 // pred_check
      _
    $region27: #{sigmoid_svm_forward.1} parent=1 // pred_check_branch
      %146 = sbr.rel (0) target = $region29
    $region28: #{sigmoid_svm_forward.1} parent=1 // pred_region
      _
    $region29: #{sigmoid_svm_forward.1} parent=1 // pred_fallthru
      _
    // Predicated region
    $region30: #{sigmoid_svm_forward.1} parent=1 // pred_check
      _
    $region31: #{sigmoid_svm_forward.1} parent=1 // pred_check_branch
      %148 = sbr.rel (0) target = $region33
    $region32: #{sigmoid_svm_forward.1} parent=1 // pred_region
      _
    $region33: #{sigmoid_svm_forward.1} parent=1 // pred_fallthru
      _
    %149 = vsyncpa [#allocation4], 1

</llo_original>
